<compile_context>
chip_gen: v5e
topology: v5e:2x2
jax: 0.10.0
libtpu: 0.0.40
codegen_flags: <defaults>
</compile_context>

<pallas_src>
import jax
import jax.numpy as jnp
from jax.experimental import pallas as pl
from jax.experimental.pallas import tpu as pltpu


LANE = 128               # lane-pad feature dims to this width
TM = 256                 # node-row tile (destination nodes)
TK = 512                 # source-node (reduction) tile
FUSED_MAX_NODES = 2048   # padded node count below which the fused path is used
VMEM_LIMIT = 32 * 1024 * 1024


def _ceil_to(v, m):
    return m * (-(-v // m))


def _tiled_params():
    return pltpu.CompilerParams(
        dimension_semantics=("parallel", "arbitrary"),
        vmem_limit_bytes=VMEM_LIMIT,
    )


def _fused_params():
    return pltpu.CompilerParams(vmem_limit_bytes=VMEM_LIMIT)


# ----------------------------- kernel bodies ------------------------------

def agg1_kernel(a_ref, x_ref, w1_ref, b1_ref, w2_ref, out_ref, acc_ref):
    """acc += A_blk @ (X_kblk @ W1); at k==last: out = relu(acc + b1) @ W2."""
    k = pl.program_id(1)

    @pl.when(k == 0)
    def _():
        acc_ref[...] = jnp.zeros_like(acc_ref)

    # Recompute the layer-1 feature transform for this K block of source
    # nodes (cheap: f_in << TM), so XW1 never touches HBM.
    z_k = jnp.dot(x_ref[...], w1_ref[...],
                  preferred_element_type=jnp.float32).astype(jnp.bfloat16)
    acc_ref[...] += jnp.dot(a_ref[...], z_k,
                            preferred_element_type=jnp.float32)

    @pl.when(k == pl.num_programs(1) - 1)
    def _():
        h = jnp.maximum(acc_ref[...] + b1_ref[...], 0.0)
        out_ref[...] = jnp.dot(h.astype(jnp.bfloat16), w2_ref[...],
                               preferred_element_type=jnp.float32
                               ).astype(out_ref.dtype)


def agg2_kernel(a_ref, z_ref, b2_ref, wfc_ref, bfc_ref, out_ref, acc_ref):
    """acc += A_blk @ Z_kblk; at k==last: out = sum(relu(acc+b2)*wfc) + bfc."""
    k = pl.program_id(1)

    @pl.when(k == 0)
    def _():
        acc_ref[...] = jnp.zeros_like(acc_ref)

    acc_ref[...] += jnp.dot(a_ref[...], z_ref[...],
                            preferred_element_type=jnp.float32)

    @pl.when(k == pl.num_programs(1) - 1)
    def _():
        h = jnp.maximum(acc_ref[...] + b2_ref[...], 0.0)
        out_ref[...] = (jnp.sum(h * wfc_ref[...], axis=-1, keepdims=True)
                        + bfc_ref[0])


def fused_kernel(a_ref, x_ref, w1_ref, b1_ref, w2_ref, b2_ref, wfc_ref,
                 bfc_ref, out_ref):
    """Whole forward in VMEM for small graphs (single launch, no grid)."""
    z1 = jnp.dot(x_ref[...], w1_ref[...],
                 preferred_element_type=jnp.float32).astype(jnp.bfloat16)
    h1 = jnp.maximum(
        jnp.dot(a_ref[...], z1, preferred_element_type=jnp.float32)
        + b1_ref[...], 0.0)
    z2 = jnp.dot(h1.astype(jnp.bfloat16), w2_ref[...],
                 preferred_element_type=jnp.float32).astype(jnp.bfloat16)
    h2 = jnp.maximum(
        jnp.dot(a_ref[...], z2, preferred_element_type=jnp.float32)
        + b2_ref[...], 0.0)
    out_ref[...] = (jnp.sum(h2 * wfc_ref[...], axis=-1, keepdims=True)
                    + bfc_ref[0])


# ------------------------------- wrapper ----------------------------------

def gcn_forward(a_hat, x, w1, b1, w2, b2, wfc, bfc, *, force_tiled=False):
    """relu(A @ (X @ W1) + b1) -> relu(A @ (. @ W2) + b2) -> Linear(., 1)."""
    n, f_in = x.shape
    hidden = w1.shape[1]
    out_ch = w2.shape[1]

    h_pad = _ceil_to(hidden, LANE)
    o_pad = _ceil_to(out_ch, LANE)

    use_fused = (not force_tiled) and (_ceil_to(n, LANE) <= FUSED_MAX_NODES)
    assert TK % TM == 0
    row_mult = LANE if use_fused else TK
    n_pad = _ceil_to(n, row_mult)

    # ---- padding (zero rows/cols; see invariant note at top of file) ----
    a_p = jnp.zeros((n_pad, n_pad), jnp.bfloat16).at[:n, :n].set(
        a_hat.astype(jnp.bfloat16))
    x_p = jnp.zeros((n_pad, f_in), jnp.bfloat16).at[:n, :].set(
        x.astype(jnp.bfloat16))
    w1_p = jnp.zeros((f_in, h_pad), jnp.bfloat16).at[:, :hidden].set(
        w1.astype(jnp.bfloat16))
    b1_p = jnp.zeros((1, h_pad), jnp.float32).at[0, :hidden].set(
        b1.reshape(-1).astype(jnp.float32))
    w2_p = jnp.zeros((h_pad, o_pad), jnp.bfloat16).at[:hidden, :out_ch].set(
        w2.astype(jnp.bfloat16))
    b2_p = jnp.zeros((1, o_pad), jnp.float32).at[0, :out_ch].set(
        b2.reshape(-1).astype(jnp.float32))
    wfc_p = jnp.zeros((1, o_pad), jnp.float32).at[0, :out_ch].set(
        wfc.reshape(-1).astype(jnp.float32))
    bfc_p = jnp.asarray(bfc, jnp.float32).reshape(1)

    if use_fused:
        # ---------------- small-graph fused path (single launch) ----------
        out_p = pl.pallas_call(
            fused_kernel,
            out_shape=jax.ShapeDtypeStruct((n_pad, 1), jnp.float32),
            in_specs=[pl.BlockSpec(memory_space=pltpu.MemorySpace.VMEM)] * 7
                     + [pl.BlockSpec(memory_space=pltpu.MemorySpace.SMEM)],
            out_specs=pl.BlockSpec(memory_space=pltpu.MemorySpace.VMEM),
            compiler_params=_fused_params(),
        )(a_p, x_p, w1_p, b1_p, w2_p, b2_p, wfc_p, bfc_p)
        return out_p[:n]

    # ------------------- large-graph K-tiled streaming path ---------------
    grid = (n_pad // TM, n_pad // TK)

    # 1) H1W2 = relu(A @ (X @ W1) + b1) @ W2   (row x K tiled, XW1 recomputed)
    h1w2 = pl.pallas_call(
        agg1_kernel,
        out_shape=jax.ShapeDtypeStruct((n_pad, o_pad), jnp.bfloat16),
        grid_spec=pltpu.PrefetchScalarGridSpec(
            num_scalar_prefetch=0,
            grid=grid,
            in_specs=[
                pl.BlockSpec((TM, TK), lambda i, k: (i, k)),      # A block
                pl.BlockSpec((TK, f_in), lambda i, k: (k, 0)),    # X K-block
                pl.BlockSpec((f_in, h_pad), lambda i, k: (0, 0)),  # W1
                pl.BlockSpec((1, h_pad), lambda i, k: (0, 0)),     # b1
                pl.BlockSpec((h_pad, o_pad), lambda i, k: (0, 0)),  # W2
            ],
            out_specs=pl.BlockSpec((TM, o_pad), lambda i, k: (i, 0)),
            scratch_shapes=[pltpu.VMEM((TM, h_pad), jnp.float32)],
        ),
        compiler_params=_tiled_params(),
    )(a_p, x_p, w1_p, b1_p, w2_p)

    # 2) out = sum(relu(A @ H1W2 + b2) * wfc, -1) + bfc   (row x K tiled)
    out_p = pl.pallas_call(
        agg2_kernel,
        out_shape=jax.ShapeDtypeStruct((n_pad, 1), jnp.float32),
        grid_spec=pltpu.PrefetchScalarGridSpec(
            num_scalar_prefetch=0,
            grid=grid,
            in_specs=[
                pl.BlockSpec((TM, TK), lambda i, k: (i, k)),      # A block
                pl.BlockSpec((TK, o_pad), lambda i, k: (k, 0)),   # H1W2 K-blk
                pl.BlockSpec((1, o_pad), lambda i, k: (0, 0)),    # b2
                pl.BlockSpec((1, o_pad), lambda i, k: (0, 0)),    # wfc row
                pl.BlockSpec(memory_space=pltpu.MemorySpace.SMEM),  # bfc
            ],
            out_specs=pl.BlockSpec((TM, 1), lambda i, k: (i, 0)),
            scratch_shapes=[pltpu.VMEM((TM, o_pad), jnp.float32)],
        ),
        compiler_params=_tiled_params(),
    )(a_p, h1w2, b2_p, wfc_p, bfc_p)

    return out_p[:n]


# --------------------------- graph preprocessing ---------------------------

def build_normalized_adjacency(edge_index, num_nodes):
    """Dense D^-1/2 (A + I) D^-1/2 matching PyG gcn_norm (unweighted edges).

    Duplicate edges accumulate (scatter-add parity); self-loops are only added
    to nodes that do not already have one (add_remaining_self_loops parity).
    """
    src, dst = edge_index[0], edge_index[1]
    adj = jnp.zeros((num_nodes, num_nodes), dtype=jnp.float32)
    adj = adj.at[dst, src].add(1.0)                  # adj[t, s] += 1 per s->t
    idx = jnp.arange(num_nodes)
    diag = adj[idx, idx]
    adj = adj.at[idx, idx].add(jnp.where(diag > 0, 0.0, 1.0))
    deg = jnp.sum(adj, axis=1)
    d_inv_sqrt = jnp.where(deg > 0, 1.0 / jnp.sqrt(deg), 0.0)
    return adj * d_inv_sqrt[:, None] * d_inv_sqrt[None, :]


def glorot(key, shape):
    fan_in, fan_out = shape[0], shape[1]
    limit = jnp.sqrt(6.0 / (fan_in + fan_out))
    return jax.random.uniform(key, shape, jnp.float32, -limit, limit)


# ----------------------------------- main -----------------------------------

if __name__ == "__main__":
    in_channels, hidden, out_channels = 16, 64, 8

    key = jax.random.PRNGKey(0)
    k_w1, k_w2, k_wfc, k_bfc, k_g1, k_g2 = jax.random.split(key, 6)

    # deterministic parameter init (GCNConv: glorot weight, zero bias;
    # nn.Linear fc: glorot weight + small bias — no checkpoint available)
    w1 = glorot(k_w1, (in_channels, hidden))
    b1 = jnp.zeros((1, hidden), dtype=jnp.float32)
    w2 = glorot(k_w2, (hidden, out_channels))
    b2 = jnp.zeros((1, out_channels), dtype=jnp.float32)
    wfc = glorot(k_wfc, (out_channels, 1))
    bfc = jax.random.uniform(k_bfc, (1, 1), jnp.float32, -0.1, 0.1)

    def run_case(k, num_nodes, num_edges, force_tiled):
        kx, ks, kd = jax.random.split(k, 3)
        # stand-in for the standardized user/badge feature matrix
        x = jax.random.normal(kx, (num_nodes, in_channels), dtype=jnp.float32)
        src = jax.random.randint(ks, (num_edges,), 0, num_nodes)
        dst = jax.random.randint(kd, (num_edges,), 0, num_nodes)
        a_hat = build_normalized_adjacency(jnp.stack([src, dst], axis=0),
                                           num_nodes)

        out = gcn_forward(a_hat, x, w1, b1, w2, b2, wfc, bfc,
                          force_tiled=force_tiled)
        out = jax.block_until_ready(out)

        # pure-JAX f32 reference (kernel uses bf16 MXU operands with f32
        # accumulation -> relaxed tolerance)
        h1 = jnp.maximum(a_hat @ (x @ w1) + b1, 0.0)
        h2 = jnp.maximum(a_hat @ (h1 @ w2) + b2, 0.0)
        ref = h2 @ wfc + bfc

        assert out.shape == (num_nodes, 1)
        err = float(jnp.max(jnp.abs(out - ref)))
        tol = max(5e-2, 5e-2 * float(jnp.max(jnp.abs(ref))))
        assert err < tol, f"max abs error {err} (tol {tol})"

    # fused small-graph path (n_pad = 256, single pallas_call)
    run_case(k_g1, 200, 1024, force_tiled=False)
    # K-tiled streaming path (n_pad = 1024, grid = (4 row tiles, 2 K tiles))
    run_case(k_g2, 600, 2048, force_tiled=True)

    print("KERNEL_OK")
</pallas_src>

<mosaic_0001>
module attributes {stable_mosaic.version = 11 : i64} {
  func.func @fused_kernel(%arg0: memref<256x256xbf16, #tpu.memory_space<vmem>>, %arg1: memref<256x16xbf16, #tpu.memory_space<vmem>>, %arg2: memref<16x128xbf16, #tpu.memory_space<vmem>>, %arg3: memref<1x128xf32, #tpu.memory_space<vmem>>, %arg4: memref<128x128xbf16, #tpu.memory_space<vmem>>, %arg5: memref<1x128xf32, #tpu.memory_space<vmem>>, %arg6: memref<1x128xf32, #tpu.memory_space<vmem>>, %arg7: memref<1xf32, #tpu.memory_space<smem>>, %arg8: memref<256x1xf32, #tpu.memory_space<vmem>>) attributes {dimension_semantics = [], scalar_prefetch = 0 : i64, scratch_operands = 0 : i64, tpu.core_type = #tpu.core_type<tc>} {
    %c0 = arith.constant 0 : index
    %c0_0 = arith.constant 0 : index
    %0 = vector.load %arg1[%c0, %c0_0] : memref<256x16xbf16, #tpu.memory_space<vmem>>, vector<256x16xbf16>
    %c0_1 = arith.constant 0 : index
    %c0_2 = arith.constant 0 : index
    %1 = vector.load %arg2[%c0_1, %c0_2] : memref<16x128xbf16, #tpu.memory_space<vmem>>, vector<16x128xbf16>
    %cst = arith.constant dense<0.000000e+00> : vector<256x128xf32>
    %2 = tpu.matmul %0, %1, %cst {dimension_numbers = #tpu.dot_dimension_numbers<[1], [0], [0], [1], [0, 0, 1, 1], [], []>} : vector<256x16xbf16>, vector<16x128xbf16>, vector<256x128xf32> -> vector<256x128xf32>
    %3 = arith.truncf %2 : vector<256x128xf32> to vector<256x128xbf16>
    %c0_3 = arith.constant 0 : index
    %c0_4 = arith.constant 0 : index
    %4 = vector.load %arg0[%c0_3, %c0_4] : memref<256x256xbf16, #tpu.memory_space<vmem>>, vector<256x256xbf16>
    %cst_5 = arith.constant dense<0.000000e+00> : vector<256x128xf32>
    %5 = tpu.matmul %4, %3, %cst_5 {dimension_numbers = #tpu.dot_dimension_numbers<[1], [0], [0], [1], [0, 0, 1, 1], [], []>} : vector<256x256xbf16>, vector<256x128xbf16>, vector<256x128xf32> -> vector<256x128xf32>
    %c0_6 = arith.constant 0 : index
    %c0_7 = arith.constant 0 : index
    %6 = vector.load %arg3[%c0_6, %c0_7] : memref<1x128xf32, #tpu.memory_space<vmem>>, vector<1x128xf32>
    %7 = vector.broadcast %6 : vector<1x128xf32> to vector<256x128xf32>
    %8 = arith.addf %5, %7 : vector<256x128xf32>
    %cst_8 = arith.constant 0.000000e+00 : f32
    %9 = vector.broadcast %cst_8 : f32 to vector<256x128xf32>
    %10 = arith.maximumf %8, %9 : vector<256x128xf32>
    %11 = arith.truncf %10 : vector<256x128xf32> to vector<256x128xbf16>
    %c0_9 = arith.constant 0 : index
    %c0_10 = arith.constant 0 : index
    %12 = vector.load %arg4[%c0_9, %c0_10] : memref<128x128xbf16, #tpu.memory_space<vmem>>, vector<128x128xbf16>
    %cst_11 = arith.constant dense<0.000000e+00> : vector<256x128xf32>
    %13 = tpu.matmul %11, %12, %cst_11 {dimension_numbers = #tpu.dot_dimension_numbers<[1], [0], [0], [1], [0, 0, 1, 1], [], []>} : vector<256x128xbf16>, vector<128x128xbf16>, vector<256x128xf32> -> vector<256x128xf32>
    %14 = arith.truncf %13 : vector<256x128xf32> to vector<256x128xbf16>
    %c0_12 = arith.constant 0 : index
    %c0_13 = arith.constant 0 : index
    %15 = vector.load %arg0[%c0_12, %c0_13] : memref<256x256xbf16, #tpu.memory_space<vmem>>, vector<256x256xbf16>
    %cst_14 = arith.constant dense<0.000000e+00> : vector<256x128xf32>
    %16 = tpu.matmul %15, %14, %cst_14 {dimension_numbers = #tpu.dot_dimension_numbers<[1], [0], [0], [1], [0, 0, 1, 1], [], []>} : vector<256x256xbf16>, vector<256x128xbf16>, vector<256x128xf32> -> vector<256x128xf32>
    %c0_15 = arith.constant 0 : index
    %c0_16 = arith.constant 0 : index
    %17 = vector.load %arg5[%c0_15, %c0_16] : memref<1x128xf32, #tpu.memory_space<vmem>>, vector<1x128xf32>
    %18 = vector.broadcast %17 : vector<1x128xf32> to vector<256x128xf32>
    %19 = arith.addf %16, %18 : vector<256x128xf32>
    %cst_17 = arith.constant 0.000000e+00 : f32
    %20 = vector.broadcast %cst_17 : f32 to vector<256x128xf32>
    %21 = arith.maximumf %19, %20 : vector<256x128xf32>
    %c0_18 = arith.constant 0 : index
    %c0_19 = arith.constant 0 : index
    %22 = vector.load %arg6[%c0_18, %c0_19] : memref<1x128xf32, #tpu.memory_space<vmem>>, vector<1x128xf32>
    %23 = vector.broadcast %22 : vector<1x128xf32> to vector<256x128xf32>
    %24 = arith.mulf %21, %23 : vector<256x128xf32>
    %cst_20 = arith.constant dense<0.000000e+00> : vector<256xf32>
    %25 = vector.multi_reduction <add>, %24, %cst_20 [1] : vector<256x128xf32> to vector<256xf32>
    %26 = vector.shape_cast %25 : vector<256xf32> to vector<256x1xf32>
    %c0_21 = arith.constant 0 : index
    %27 = memref.load %arg7[%c0_21] : memref<1xf32, #tpu.memory_space<smem>>
    %28 = vector.broadcast %27 : f32 to vector<256x1xf32>
    %29 = arith.addf %26, %28 : vector<256x1xf32>
    %c0_22 = arith.constant 0 : index
    %c0_23 = arith.constant 0 : index
    %30 = vector.load %arg8[%c0_22, %c0_23] : memref<256x1xf32, #tpu.memory_space<vmem>>, vector<256x1xf32>
    tpu.vector_store %arg8[%c0_22, %c0_23], %29 {strides = array<i32>} : memref<256x1xf32, #tpu.memory_space<vmem>>, vector<256x1xf32>,
    return
  }
}

</mosaic_0001>

<llo_original>
// kernel: tpu_custom_call.1
$region0: #{tpu_custom_call.1}
  #allocation0 [shape = 'u32[]', space=smem, size = 0x4, offset = 0x4, fixed_abs, tag = 'smem constant byte address 0x4 - core index']
  #allocation1 [shape = 'u32[72,128]{1,0:T(1,128)}', space=vmem, size = 0x9000, scoped, tag = 'internal scratch']
  #allocation2 [shape = 'f32[1]{0:T(128)S(6)}', space=smem, size = 0x200, scoped, tag = 'scoped memory for tpu_custom_call.1']
  %s0 = inlined_call_operand.hbm [shape: bf16[256,256], index: 0, kind: input, shape index: {}]
  %s1 = inlined_call_operand.vmem [shape: bf16[256,16], index: 1, kind: input, shape index: {}]
  %s2 = inlined_call_operand.vmem [shape: bf16[16,128], index: 2, kind: input, shape index: {}]
  %s3 = inlined_call_operand.vmem [shape: f32[1,128], index: 3, kind: input, shape index: {}]
  %s4 = inlined_call_operand.vmem [shape: bf16[128,128], index: 4, kind: input, shape index: {}]
  %s5 = inlined_call_operand.vmem [shape: f32[1,128], index: 5, kind: input, shape index: {}]
  %s6 = inlined_call_operand.vmem [shape: f32[1,128], index: 6, kind: input, shape index: {}]
  %s7 = inlined_call_operand.<no memory space> [shape: f32[1], index: 7, kind: input, shape index: {}]
  %s8 = inlined_call_operand.vmem [shape: f32[256,1], index: 8, kind: output, shape index: {}]
  %s9 = sld [smem:[#allocation0]]
  $region46: #{tpu_custom_call.1} parent=0
    _
  %s11 = ssub.s32 1, %s9
  %s12 = scalar_select 0, %s11, %s9
  %13 = sst [smem:[#allocation2]] %s7
  $region1: #{tpu_custom_call.1} parent=0
    #allocation3 [shape = 'u8[131072]{0}', space=vmem, size = 0x20000, scoped, tag = 'input window, operand 0, single buffered']
    #allocation4 [shape = 's32[1]{0}', space=sflag, size = 0x4, scoped, tag = 'scoped memory for tpu_custom_call.1']
    %14 = vsyncpa [#allocation4], 0
    // Predicated region
    $region2: #{tpu_custom_call.1} parent=1 // pred_check
      _
    $region3: #{tpu_custom_call.1} parent=1 // pred_check_branch
      %16 = sbr.rel (0) target = $region5
    $region4: #{tpu_custom_call.1} parent=1 // pred_region
      %18 = vsyncadd [#allocation4], 0
      %s19 = sshll.u32 %s0, 4
      %s20 = int_to_ptr.hbm [resolvable:$true] %s19
      %s21 = sshll.u32 [#allocation3], 4
      %s22 = int_to_ptr.vmem [resolvable:$true] %s21
      %27 = dma.hbm_to_vmem [thread:$0]  %s20, 4096, %s22, [#allocation4], 128, 128, 8
    $region5: #{tpu_custom_call.1} parent=1 // pred_fallthru
      _
    // Predicated region
    $region6: #{tpu_custom_call.1} parent=1 // pred_check
      _
    $region7: #{tpu_custom_call.1} parent=1 // pred_check_branch
      %29 = sbr.rel (0) target = $region9
    $region8: #{tpu_custom_call.1} parent=1 // pred_region
      _
    $region9: #{tpu_custom_call.1} parent=1 // pred_fallthru
      _
    // Predicated region
    $region10: #{tpu_custom_call.1} parent=1 // pred_check
      _
    $region11: #{tpu_custom_call.1} parent=1 // pred_check_branch
      %31 = sbr.rel (0) target = $region13
    $region12: #{tpu_custom_call.1} parent=1 // pred_region
      _
    $region13: #{tpu_custom_call.1} parent=1 // pred_fallthru
      _
    // Predicated region
    $region14: #{tpu_custom_call.1} parent=1 // pred_check
      _
    $region15: #{tpu_custom_call.1} parent=1 // pred_check_branch
      %33 = sbr.rel (0) target = $region17
    $region16: #{tpu_custom_call.1} parent=1 // pred_region
      _
    $region17: #{tpu_custom_call.1} parent=1 // pred_fallthru
      _
    // Predicated region
    $region18: #{tpu_custom_call.1} parent=1 // pred_check
      _
    $region19: #{tpu_custom_call.1} parent=1 // pred_check_branch
      %35 = sbr.rel (0) target = $region21
    $region20: #{tpu_custom_call.1} parent=1 // pred_region
      _
    $region21: #{tpu_custom_call.1} parent=1 // pred_fallthru
      _
    // Predicated region
    $region22: #{tpu_custom_call.1} parent=1 // pred_check
      _
    $region23: #{tpu_custom_call.1} parent=1 // pred_check_branch
      %37 = sbr.rel (0) target = $region25
    $region24: #{tpu_custom_call.1} parent=1 // pred_region
      _
    $region25: #{tpu_custom_call.1} parent=1 // pred_fallthru
      _
    // Predicated region
    $region26: #{tpu_custom_call.1} parent=1 // pred_check
      _
    $region27: #{tpu_custom_call.1} parent=1 // pred_check_branch
      %39 = sbr.rel (0) target = $region29
    $region28: #{tpu_custom_call.1} parent=1 // pred_region
      _
    $region29: #{tpu_custom_call.1} parent=1 // pred_fallthru
      _
    // Predicated region
    $region30: #{tpu_custom_call.1} parent=1 // pred_check
      _
    $region31: #{tpu_custom_call.1} parent=1 // pred_check_branch
      %41 = sbr.rel (0) target = $region33
    $region32: #{tpu_custom_call.1} parent=1 // pred_region
      _
    $region33: #{tpu_custom_call.1} parent=1 // pred_fallthru
      _
    // Predicated region
    $region34: #{tpu_custom_call.1} parent=1 // pred_check
      _
    $region35: #{tpu_custom_call.1} parent=1 // pred_check_branch
      %43 = sbr.rel (0) target = $region37
    $region36: #{tpu_custom_call.1} parent=1 // pred_region
      %45 = dma.done [#allocation4], 4096
    $region37: #{tpu_custom_call.1} parent=1 // pred_fallthru
      _
    %v47 = vld [vmem:[%s1] sm:$0xf]
    %v48 = vld [vmem:[%s1 + $0x4] sm:$0xf]
    %v49 = vld [vmem:[%s1 + $0x8] sm:$0xf]
    %v50 = vld [vmem:[%s1 + $0xc] sm:$0xf]
    %v51 = vld [vmem:[%s1 + $0x10] sm:$0xf]
    %v52 = vld [vmem:[%s1 + $0x14] sm:$0xf]
    %v53 = vld [vmem:[%s1 + $0x18] sm:$0xf]
    %v54 = vld [vmem:[%s1 + $0x1c] sm:$0xf]
    %v55 = vld [vmem:[%s1 + $0x20] sm:$0xf]
    %v56 = vld [vmem:[%s1 + $0x24] sm:$0xf]
    %v57 = vld [vmem:[%s1 + $0x28] sm:$0xf]
    %v58 = vld [vmem:[%s1 + $0x2c] sm:$0xf]
    %v59 = vld [vmem:[%s1 + $0x30] sm:$0xf]
    %v60 = vld [vmem:[%s1 + $0x34] sm:$0xf]
    %v61 = vld [vmem:[%s1 + $0x38] sm:$0xf]
    %v62 = vld [vmem:[%s1 + $0x3c] sm:$0xf]
    %v63 = vld [vmem:[%s1 + $0x40] sm:$0xf]
    %v64 = vld [vmem:[%s1 + $0x44] sm:$0xf]
    %v65 = vld [vmem:[%s1 + $0x48] sm:$0xf]
    %v66 = vld [vmem:[%s1 + $0x4c] sm:$0xf]
    %v67 = vld [vmem:[%s1 + $0x50] sm:$0xf]
    %v68 = vld [vmem:[%s1 + $0x54] sm:$0xf]
    %v69 = vld [vmem:[%s1 + $0x58] sm:$0xf]
    %v70 = vld [vmem:[%s1 + $0x5c] sm:$0xf]
    %v71 = vld [vmem:[%s1 + $0x60] sm:$0xf]
    %v72 = vld [vmem:[%s1 + $0x64] sm:$0xf]
    %v73 = vld [vmem:[%s1 + $0x68] sm:$0xf]
    %v74 = vld [vmem:[%s1 + $0x6c] sm:$0xf]
    %v75 = vld [vmem:[%s1 + $0x70] sm:$0xf]
    %v76 = vld [vmem:[%s1 + $0x74] sm:$0xf]
    %v77 = vld [vmem:[%s1 + $0x78] sm:$0xf]
    %v78 = vld [vmem:[%s1 + $0x7c] sm:$0xf]
    %v79 = vld [vmem:[%s2] sm:$0xf]
    %v80 = vld [vmem:[%s2 + $0x4] sm:$0xf]
    %v113 = vunpack.c.l.b16 %v47
    %v114 = vunpack.c.l.b16 %v48
    %v115 = vunpack.c.l.b16 %v49
    %v116 = vunpack.c.l.b16 %v50
    %v117 = vunpack.c.l.b16 %v51
    %v118 = vunpack.c.l.b16 %v52
    %v119 = vunpack.c.l.b16 %v53
    %v120 = vunpack.c.l.b16 %v54
    %v121 = vunpack.c.l.b16 %v55
    %v122 = vunpack.c.l.b16 %v56
    %v123 = vunpack.c.l.b16 %v57
    %v124 = vunpack.c.l.b16 %v58
    %v125 = vunpack.c.l.b16 %v59
    %v126 = vunpack.c.l.b16 %v60
    %v127 = vunpack.c.l.b16 %v61
    %v128 = vunpack.c.l.b16 %v62
    %v129 = vunpack.c.l.b16 %v63
    %v130 = vunpack.c.l.b16 %v64
    %v131 = vunpack.c.l.b16 %v65
    %v132 = vunpack.c.l.b16 %v66
    %v133 = vunpack.c.l.b16 %v67
    %v134 = vunpack.c.l.b16 %v68
    %v135 = vunpack.c.l.b16 %v69
    %v136 = vunpack.c.l.b16 %v70
    %v137 = vunpack.c.l.b16 %v71
    %v138 = vunpack.c.l.b16 %v72
    %v139 = vunpack.c.l.b16 %v73
    %v140 = vunpack.c.l.b16 %v74
    %v141 = vunpack.c.l.b16 %v75
    %v142 = vunpack.c.l.b16 %v76
    %v143 = vunpack.c.l.b16 %v77
    %v144 = vunpack.c.l.b16 %v78
    %v145 = vpack.c.b16 %v114, %v113
    %v146 = vpack.c.b16 %v116, %v115
    %v147 = vpack.c.b16 %v118, %v117
    %v148 = vpack.c.b16 %v120, %v119
    %v149 = vpack.c.b16 %v122, %v121
    %v150 = vpack.c.b16 %v124, %v123
    %v151 = vpack.c.b16 %v126, %v125
    %v152 = vpack.c.b16 %v128, %v127
    %v153 = vpack.c.b16 %v130, %v129
    %v154 = vpack.c.b16 %v132, %v131
    %v155 = vpack.c.b16 %v134, %v133
    %v156 = vpack.c.b16 %v136, %v135
    %v157 = vpack.c.b16 %v138, %v137
    %v158 = vpack.c.b16 %v140, %v139
    %v159 = vpack.c.b16 %v142, %v141
    %v160 = vpack.c.b16 %v144, %v143
    %v163 = vunpack.c.l.b16 %v79
    %v164 = vunpack.c.l.b16 %v80
    %v165 = vpack.c.b16 %v164, %v163
    %vm167 = vcmask 130048
    %v169 = vsel %vm167, %v145, 0
    %v172 = vsel %vm167, %v146, 0
    %v175 = vsel %vm167, %v147, 0
    %v178 = vsel %vm167, %v148, 0
    %v181 = vsel %vm167, %v149, 0
    %v184 = vsel %vm167, %v150, 0
    %v187 = vsel %vm167, %v151, 0
    %v190 = vsel %vm167, %v152, 0
    %v193 = vsel %vm167, %v153, 0
    %v196 = vsel %vm167, %v154, 0
    %v199 = vsel %vm167, %v155, 0
    %v202 = vsel %vm167, %v156, 0
    %v205 = vsel %vm167, %v157, 0
    %v208 = vsel %vm167, %v158, 0
    %v211 = vsel %vm167, %v159, 0
    %v214 = vsel %vm167, %v160, 0
    %216 = vmatpush.bf16.msra.mxu0 0
    %217 = vmatpush.bf16.msra.mxu0 0
    %218 = vmatpush.bf16.msra.mxu0 0
    %219 = vmatpush.bf16.msra.mxu0 0
    %220 = vmatpush.bf16.msra.mxu0 0
    %221 = vmatpush.bf16.msra.mxu0 0
    %222 = vmatpush.bf16.msra.mxu0 0
    %223 = vmatpush.bf16.msra.mxu0 %v165
    %224 = vmatmul.bf16.gmra.mxu0 %v169
    %v225 = vpop.f32.mrf.mxu0
    %v226 = vadd.f32 0.0, %v225
    %v227 = vpop.f32.mrf.mxu0
    %v228 = vadd.f32 0.0, %v227
    %229 = vmatmul.bf16.gmra.mxu0 %v172
    %v230 = vpop.f32.mrf.mxu0
    %v231 = vadd.f32 0.0, %v230
    %v232 = vpop.f32.mrf.mxu0
    %v233 = vadd.f32 0.0, %v232
    %234 = vmatmul.bf16.gmra.mxu0 %v175
    %v235 = vpop.f32.mrf.mxu0
    %v236 = vadd.f32 0.0, %v235
    %v237 = vpop.f32.mrf.mxu0
    %v238 = vadd.f32 0.0, %v237
    %239 = vmatmul.bf16.gmra.mxu0 %v178
    %v240 = vpop.f32.mrf.mxu0
    %v241 = vadd.f32 0.0, %v240
    %v242 = vpop.f32.mrf.mxu0
    %v243 = vadd.f32 0.0, %v242
    %244 = vmatmul.bf16.gmra.mxu0 %v181
    %v245 = vpop.f32.mrf.mxu0
    %v246 = vadd.f32 0.0, %v245
    %v247 = vpop.f32.mrf.mxu0
    %v248 = vadd.f32 0.0, %v247
    %249 = vmatmul.bf16.gmra.mxu0 %v184
    %v250 = vpop.f32.mrf.mxu0
    %v251 = vadd.f32 0.0, %v250
    %v252 = vpop.f32.mrf.mxu0
    %v253 = vadd.f32 0.0, %v252
    %254 = vmatmul.bf16.gmra.mxu0 %v187
    %v255 = vpop.f32.mrf.mxu0
    %v256 = vadd.f32 0.0, %v255
    %v257 = vpop.f32.mrf.mxu0
    %v258 = vadd.f32 0.0, %v257
    %259 = vmatmul.bf16.gmra.mxu0 %v190
    %v260 = vpop.f32.mrf.mxu0
    %v261 = vadd.f32 0.0, %v260
    %v262 = vpop.f32.mrf.mxu0
    %v263 = vadd.f32 0.0, %v262
    %264 = vmatmul.bf16.gmra.mxu0 %v193
    %v265 = vpop.f32.mrf.mxu0
    %v266 = vadd.f32 0.0, %v265
    %v267 = vpop.f32.mrf.mxu0
    %v268 = vadd.f32 0.0, %v267
    %269 = vmatmul.bf16.gmra.mxu0 %v196
    %v270 = vpop.f32.mrf.mxu0
    %v271 = vadd.f32 0.0, %v270
    %v272 = vpop.f32.mrf.mxu0
    %v273 = vadd.f32 0.0, %v272
    %274 = vmatmul.bf16.gmra.mxu0 %v199
    %v275 = vpop.f32.mrf.mxu0
    %v276 = vadd.f32 0.0, %v275
    %v277 = vpop.f32.mrf.mxu0
    %v278 = vadd.f32 0.0, %v277
    %279 = vmatmul.bf16.gmra.mxu0 %v202
    %v280 = vpop.f32.mrf.mxu0
    %v281 = vadd.f32 0.0, %v280
    %v282 = vpop.f32.mrf.mxu0
    %v283 = vadd.f32 0.0, %v282
    %284 = vmatmul.bf16.gmra.mxu0 %v205
    %v285 = vpop.f32.mrf.mxu0
    %v286 = vadd.f32 0.0, %v285
    %v287 = vpop.f32.mrf.mxu0
    %v288 = vadd.f32 0.0, %v287
    %289 = vmatmul.bf16.gmra.mxu0 %v208
    %v290 = vpop.f32.mrf.mxu0
    %v291 = vadd.f32 0.0, %v290
    %v292 = vpop.f32.mrf.mxu0
    %v293 = vadd.f32 0.0, %v292
    %294 = vmatmul.bf16.gmra.mxu0 %v211
    %v295 = vpop.f32.mrf.mxu0
    %v296 = vadd.f32 0.0, %v295
    %v297 = vpop.f32.mrf.mxu0
    %v298 = vadd.f32 0.0, %v297
    %299 = vmatmul.bf16.gmra.mxu0 %v214
    %v300 = vpop.f32.mrf.mxu0
    %v301 = vadd.f32 0.0, %v300
    %v302 = vpop.f32.mrf.mxu0
    %v303 = vadd.f32 0.0, %v302
    %304 = vdwg.mxu0
    %v305 = vpack.c.bf16 %v228, %v226
    %v306 = vpack.c.bf16 %v233, %v231
    %v307 = vpack.c.bf16 %v238, %v236
    %v308 = vpack.c.bf16 %v243, %v241
    %v309 = vpack.c.bf16 %v248, %v246
    %v310 = vpack.c.bf16 %v253, %v251
    %v311 = vpack.c.bf16 %v258, %v256
    %v312 = vpack.c.bf16 %v263, %v261
    %v313 = vpack.c.bf16 %v268, %v266
    %v314 = vpack.c.bf16 %v273, %v271
    %v315 = vpack.c.bf16 %v278, %v276
    %v316 = vpack.c.bf16 %v283, %v281
    %v317 = vpack.c.bf16 %v288, %v286
    %v318 = vpack.c.bf16 %v293, %v291
    %v319 = vpack.c.bf16 %v298, %v296
    %v320 = vpack.c.bf16 %v303, %v301
    %v321 = vld [vmem:[#allocation3] sm:$0xff]
    %v322 = vld [vmem:[#allocation3 + $0x8] sm:$0xff]
    %v323 = vld [vmem:[#allocation3 + $0x10] sm:$0xff]
    %v324 = vld [vmem:[#allocation3 + $0x18] sm:$0xff]
    %v325 = vld [vmem:[#allocation3 + $0x20] sm:$0xff]
    %v326 = vld [vmem:[#allocation3 + $0x28] sm:$0xff]
    %v327 = vld [vmem:[#allocation3 + $0x30] sm:$0xff]
    %v328 = vld [vmem:[#allocation3 + $0x38] sm:$0xff]
    %v329 = vld [vmem:[#allocation3 + $0x40] sm:$0xff]
    %v330 = vld [vmem:[#allocation3 + $0x48] sm:$0xff]
    %v331 = vld [vmem:[#allocation3 + $0x50] sm:$0xff]
    %v332 = vld [vmem:[#allocation3 + $0x58] sm:$0xff]
    %v333 = vld [vmem:[#allocation3 + $0x60] sm:$0xff]
    %v334 = vld [vmem:[#allocation3 + $0x68] sm:$0xff]
    %v335 = vld [vmem:[#allocation3 + $0x70] sm:$0xff]
    %v336 = vld [vmem:[#allocation3 + $0x78] sm:$0xff]
    %v337 = vld [vmem:[#allocation3 + $0x80] sm:$0xff]
    %v338 = vld [vmem:[#allocation3 + $0x88] sm:$0xff]
    %v339 = vld [vmem:[#allocation3 + $0x90] sm:$0xff]
    %v340 = vld [vmem:[#allocation3 + $0x98] sm:$0xff]
    %v341 = vld [vmem:[#allocation3 + $0xa0] sm:$0xff]
    %v342 = vld [vmem:[#allocation3 + $0xa8] sm:$0xff]
    %v343 = vld [vmem:[#allocation3 + $0xb0] sm:$0xff]
    %v344 = vld [vmem:[#allocation3 + $0xb8] sm:$0xff]
    %v345 = vld [vmem:[#allocation3 + $0xc0] sm:$0xff]
    %v346 = vld [vmem:[#allocation3 + $0xc8] sm:$0xff]
    %v347 = vld [vmem:[#allocation3 + $0xd0] sm:$0xff]
    %v348 = vld [vmem:[#allocation3 + $0xd8] sm:$0xff]
    %v349 = vld [vmem:[#allocation3 + $0xe0] sm:$0xff]
    %v350 = vld [vmem:[#allocation3 + $0xe8] sm:$0xff]
    %v351 = vld [vmem:[#allocation3 + $0xf0] sm:$0xff]
    %v352 = vld [vmem:[#allocation3 + $0xf8] sm:$0xff]
    %v353 = vld [vmem:[%s3] sm:$0x1]
    %v355 = vperm.slane %v353, 0
    %v389 = vunpack.c.l.b16 %v321
    %v390 = vunpack.c.h.b16 %v321
    %v391 = vunpack.c.l.b16 %v322
    %v392 = vunpack.c.h.b16 %v322
    %v393 = vunpack.c.l.b16 %v323
    %v394 = vunpack.c.h.b16 %v323
    %v395 = vunpack.c.l.b16 %v324
    %v396 = vunpack.c.h.b16 %v324
    %v397 = vunpack.c.l.b16 %v325
    %v398 = vunpack.c.h.b16 %v325
    %v399 = vunpack.c.l.b16 %v326
    %v400 = vunpack.c.h.b16 %v326
    %v401 = vunpack.c.l.b16 %v327
    %v402 = vunpack.c.h.b16 %v327
    %v403 = vunpack.c.l.b16 %v328
    %v404 = vunpack.c.h.b16 %v328
    %v405 = vunpack.c.l.b16 %v329
    %v406 = vunpack.c.h.b16 %v329
    %v407 = vunpack.c.l.b16 %v330
    %v408 = vunpack.c.h.b16 %v330
    %v409 = vunpack.c.l.b16 %v331
    %v410 = vunpack.c.h.b16 %v331
    %v411 = vunpack.c.l.b16 %v332
    %v412 = vunpack.c.h.b16 %v332
    %v413 = vunpack.c.l.b16 %v333
    %v414 = vunpack.c.h.b16 %v333
    %v415 = vunpack.c.l.b16 %v334
    %v416 = vunpack.c.h.b16 %v334
    %v417 = vunpack.c.l.b16 %v335
    %v418 = vunpack.c.h.b16 %v335
    %v419 = vunpack.c.l.b16 %v336
    %v420 = vunpack.c.h.b16 %v336
    %v421 = vunpack.c.l.b16 %v337
    %v422 = vunpack.c.h.b16 %v337
    %v423 = vunpack.c.l.b16 %v338
    %v424 = vunpack.c.h.b16 %v338
    %v425 = vunpack.c.l.b16 %v339
    %v426 = vunpack.c.h.b16 %v339
    %v427 = vunpack.c.l.b16 %v340
    %v428 = vunpack.c.h.b16 %v340
    %v429 = vunpack.c.l.b16 %v341
    %v430 = vunpack.c.h.b16 %v341
    %v431 = vunpack.c.l.b16 %v342
    %v432 = vunpack.c.h.b16 %v342
    %v433 = vunpack.c.l.b16 %v343
    %v434 = vunpack.c.h.b16 %v343
    %v435 = vunpack.c.l.b16 %v344
    %v436 = vunpack.c.h.b16 %v344
    %v437 = vunpack.c.l.b16 %v345
    %v438 = vunpack.c.h.b16 %v345
    %v439 = vunpack.c.l.b16 %v346
    %v440 = vunpack.c.h.b16 %v346
    %v441 = vunpack.c.l.b16 %v347
    %v442 = vunpack.c.h.b16 %v347
    %v443 = vunpack.c.l.b16 %v348
    %v444 = vunpack.c.h.b16 %v348
    %v445 = vunpack.c.l.b16 %v349
    %v446 = vunpack.c.h.b16 %v349
    %v447 = vunpack.c.l.b16 %v350
    %v448 = vunpack.c.h.b16 %v350
    %v449 = vunpack.c.l.b16 %v351
    %v450 = vunpack.c.h.b16 %v351
    %v451 = vunpack.c.l.b16 %v352
    %v452 = vunpack.c.h.b16 %v352
    %v453 = vpack.c.b16 %v391, %v389
    %v454 = vpack.c.b16 %v392, %v390
    %v455 = vpack.c.b16 %v395, %v393
    %v456 = vpack.c.b16 %v396, %v394
    %v457 = vpack.c.b16 %v399, %v397
    %v458 = vpack.c.b16 %v400, %v398
    %v459 = vpack.c.b16 %v403, %v401
    %v460 = vpack.c.b16 %v404, %v402
    %v461 = vpack.c.b16 %v407, %v405
    %v462 = vpack.c.b16 %v408, %v406
    %v463 = vpack.c.b16 %v411, %v409
    %v464 = vpack.c.b16 %v412, %v410
    %v465 = vpack.c.b16 %v415, %v413
    %v466 = vpack.c.b16 %v416, %v414
    %v467 = vpack.c.b16 %v419, %v417
    %v468 = vpack.c.b16 %v420, %v418
    %v469 = vpack.c.b16 %v423, %v421
    %v470 = vpack.c.b16 %v424, %v422
    %v471 = vpack.c.b16 %v427, %v425
    %v472 = vpack.c.b16 %v428, %v426
    %v473 = vpack.c.b16 %v431, %v429
    %v474 = vpack.c.b16 %v432, %v430
    %v475 = vpack.c.b16 %v435, %v433
    %v476 = vpack.c.b16 %v436, %v434
    %v477 = vpack.c.b16 %v439, %v437
    %v478 = vpack.c.b16 %v440, %v438
    %v479 = vpack.c.b16 %v443, %v441
    %v480 = vpack.c.b16 %v444, %v442
    %v481 = vpack.c.b16 %v447, %v445
    %v482 = vpack.c.b16 %v448, %v446
    %v483 = vpack.c.b16 %v451, %v449
    %v484 = vpack.c.b16 %v452, %v450
    %517 = vmatpush.bf16.msra.mxu0 %v312
    %518 = vmatpush.bf16.msra.mxu0 %v311
    %519 = vmatpush.bf16.msra.mxu0 %v310
    %520 = vmatpush.bf16.msra.mxu0 %v309
    %521 = vmatpush.bf16.msra.mxu0 %v308
    %522 = vmatpush.bf16.msra.mxu0 %v307
    %523 = vmatpush.bf16.msra.mxu0 %v306
    %524 = vmatpush.bf16.msra.mxu0 %v305
    %525 = vmatmul.bf16.gmra.mxu0 %v453
    %v526 = vpop.f32.mrf.mxu0
    %v527 = vadd.f32 %v355, %v526
    %v528 = vpop.f32.mrf.mxu0
    %v529 = vadd.f32 %v355, %v528
    %530 = vmatmul.bf16.gmra.mxu0 %v455
    %v531 = vpop.f32.mrf.mxu0
    %v532 = vadd.f32 %v355, %v531
    %v533 = vpop.f32.mrf.mxu0
    %v534 = vadd.f32 %v355, %v533
    %535 = vmatmul.bf16.gmra.mxu0 %v457
    %v536 = vpop.f32.mrf.mxu0
    %v537 = vadd.f32 %v355, %v536
    %v538 = vpop.f32.mrf.mxu0
    %v539 = vadd.f32 %v355, %v538
    %540 = vmatmul.bf16.gmra.mxu0 %v459
    %v541 = vpop.f32.mrf.mxu0
    %v542 = vadd.f32 %v355, %v541
    %v543 = vpop.f32.mrf.mxu0
    %v544 = vadd.f32 %v355, %v543
    %545 = vmatmul.bf16.gmra.mxu0 %v461
    %v546 = vpop.f32.mrf.mxu0
    %v547 = vadd.f32 %v355, %v546
    %v548 = vpop.f32.mrf.mxu0
    %v549 = vadd.f32 %v355, %v548
    %550 = vmatmul.bf16.gmra.mxu0 %v463
    %v551 = vpop.f32.mrf.mxu0
    %v552 = vadd.f32 %v355, %v551
    %v553 = vpop.f32.mrf.mxu0
    %v554 = vadd.f32 %v355, %v553
    %555 = vmatmul.bf16.gmra.mxu0 %v465
    %v556 = vpop.f32.mrf.mxu0
    %v557 = vadd.f32 %v355, %v556
    %v558 = vpop.f32.mrf.mxu0
    %v559 = vadd.f32 %v355, %v558
    %560 = vmatmul.bf16.gmra.mxu0 %v467
    %v561 = vpop.f32.mrf.mxu0
    %v562 = vadd.f32 %v355, %v561
    %v563 = vpop.f32.mrf.mxu0
    %v564 = vadd.f32 %v355, %v563
    %565 = vmatmul.bf16.gmra.mxu0 %v469
    %v566 = vpop.f32.mrf.mxu0
    %v567 = vadd.f32 %v355, %v566
    %v568 = vpop.f32.mrf.mxu0
    %v569 = vadd.f32 %v355, %v568
    %570 = vmatmul.bf16.gmra.mxu0 %v471
    %v571 = vpop.f32.mrf.mxu0
    %v572 = vadd.f32 %v355, %v571
    %v573 = vpop.f32.mrf.mxu0
    %v574 = vadd.f32 %v355, %v573
    %575 = vmatmul.bf16.gmra.mxu0 %v473
    %v576 = vpop.f32.mrf.mxu0
    %v577 = vadd.f32 %v355, %v576
    %v578 = vpop.f32.mrf.mxu0
    %v579 = vadd.f32 %v355, %v578
    %580 = vmatmul.bf16.gmra.mxu0 %v475
    %v581 = vpop.f32.mrf.mxu0
    %v582 = vadd.f32 %v355, %v581
    %v583 = vpop.f32.mrf.mxu0
    %v584 = vadd.f32 %v355, %v583
    %585 = vmatmul.bf16.gmra.mxu0 %v477
    %v586 = vpop.f32.mrf.mxu0
    %v587 = vadd.f32 %v355, %v586
    %v588 = vpop.f32.mrf.mxu0
    %v589 = vadd.f32 %v355, %v588
    %590 = vmatmul.bf16.gmra.mxu0 %v479
    %v591 = vpop.f32.mrf.mxu0
    %v592 = vadd.f32 %v355, %v591
    %v593 = vpop.f32.mrf.mxu0
    %v594 = vadd.f32 %v355, %v593
    %595 = vmatmul.bf16.gmra.mxu0 %v481
    %v596 = vpop.f32.mrf.mxu0
    %v597 = vadd.f32 %v355, %v596
    %v598 = vpop.f32.mrf.mxu0
    %v599 = vadd.f32 %v355, %v598
    %600 = vmatmul.bf16.gmra.mxu0 %v483
    %v601 = vpop.f32.mrf.mxu0
    %v602 = vadd.f32 %v355, %v601
    %v603 = vpop.f32.mrf.mxu0
    %v604 = vadd.f32 %v355, %v603
    %605 = vdwg.mxu0
    %606 = vmatpush.bf16.msra.mxu0 %v320
    %607 = vmatpush.bf16.msra.mxu0 %v319
    %608 = vmatpush.bf16.msra.mxu0 %v318
    %609 = vmatpush.bf16.msra.mxu0 %v317
    %610 = vmatpush.bf16.msra.mxu0 %v316
    %611 = vmatpush.bf16.msra.mxu0 %v315
    %612 = vmatpush.bf16.msra.mxu0 %v314
    %613 = vmatpush.bf16.msra.mxu0 %v313
    %614 = vmatmul.bf16.gmra.mxu0 %v454
    %v615 = vpop.f32.mrf.mxu0
    %v616 = vadd.f32 %v527, %v615
    %v617 = vpop.f32.mrf.mxu0
    %v618 = vadd.f32 %v529, %v617
    %619 = vmatmul.bf16.gmra.mxu0 %v456
    %v620 = vpop.f32.mrf.mxu0
    %v621 = vadd.f32 %v532, %v620
    %v622 = vpop.f32.mrf.mxu0
    %v623 = vadd.f32 %v534, %v622
    %624 = vmatmul.bf16.gmra.mxu0 %v458
    %v625 = vpop.f32.mrf.mxu0
    %v626 = vadd.f32 %v537, %v625
    %v627 = vpop.f32.mrf.mxu0
    %v628 = vadd.f32 %v539, %v627
    %629 = vmatmul.bf16.gmra.mxu0 %v460
    %v630 = vpop.f32.mrf.mxu0
    %v631 = vadd.f32 %v542, %v630
    %v632 = vpop.f32.mrf.mxu0
    %v633 = vadd.f32 %v544, %v632
    %634 = vmatmul.bf16.gmra.mxu0 %v462
    %v635 = vpop.f32.mrf.mxu0
    %v636 = vadd.f32 %v547, %v635
    %v637 = vpop.f32.mrf.mxu0
    %v638 = vadd.f32 %v549, %v637
    %639 = vmatmul.bf16.gmra.mxu0 %v464
    %v640 = vpop.f32.mrf.mxu0
    %v641 = vadd.f32 %v552, %v640
    %v642 = vpop.f32.mrf.mxu0
    %v643 = vadd.f32 %v554, %v642
    %644 = vmatmul.bf16.gmra.mxu0 %v466
    %v645 = vpop.f32.mrf.mxu0
    %v646 = vadd.f32 %v557, %v645
    %v647 = vpop.f32.mrf.mxu0
    %v648 = vadd.f32 %v559, %v647
    %649 = vmatmul.bf16.gmra.mxu0 %v468
    %v650 = vpop.f32.mrf.mxu0
    %v651 = vadd.f32 %v562, %v650
    %v652 = vpop.f32.mrf.mxu0
    %v653 = vadd.f32 %v564, %v652
    %654 = vmatmul.bf16.gmra.mxu0 %v470
    %v655 = vpop.f32.mrf.mxu0
    %v656 = vadd.f32 %v567, %v655
    %v657 = vpop.f32.mrf.mxu0
    %v658 = vadd.f32 %v569, %v657
    %659 = vmatmul.bf16.gmra.mxu0 %v472
    %v660 = vpop.f32.mrf.mxu0
    %v661 = vadd.f32 %v572, %v660
    %v662 = vpop.f32.mrf.mxu0
    %v663 = vadd.f32 %v574, %v662
    %664 = vmatmul.bf16.gmra.mxu0 %v474
    %v665 = vpop.f32.mrf.mxu0
    %v666 = vadd.f32 %v577, %v665
    %v667 = vpop.f32.mrf.mxu0
    %v668 = vadd.f32 %v579, %v667
    %669 = vmatmul.bf16.gmra.mxu0 %v476
    %v670 = vpop.f32.mrf.mxu0
    %v671 = vadd.f32 %v582, %v670
    %v672 = vpop.f32.mrf.mxu0
    %v673 = vadd.f32 %v584, %v672
    %674 = vmatmul.bf16.gmra.mxu0 %v478
    %v675 = vpop.f32.mrf.mxu0
    %v676 = vadd.f32 %v587, %v675
    %v677 = vpop.f32.mrf.mxu0
    %v678 = vadd.f32 %v589, %v677
    %679 = vmatmul.bf16.gmra.mxu0 %v480
    %v680 = vpop.f32.mrf.mxu0
    %v681 = vadd.f32 %v592, %v680
    %v682 = vpop.f32.mrf.mxu0
    %v683 = vadd.f32 %v594, %v682
    %684 = vmatmul.bf16.gmra.mxu0 %v482
    %v685 = vpop.f32.mrf.mxu0
    %v686 = vadd.f32 %v597, %v685
    %v687 = vpop.f32.mrf.mxu0
    %v688 = vadd.f32 %v599, %v687
    %689 = vmatmul.bf16.gmra.mxu0 %v484
    %v690 = vpop.f32.mrf.mxu0
    %v691 = vadd.f32 %v602, %v690
    %v692 = vpop.f32.mrf.mxu0
    %v693 = vadd.f32 %v604, %v692
    %694 = vdwg.mxu0
    %v695 = vmax.f32 %v616, 0.0
    %v696 = vmax.f32 %v618, 0.0
    %v697 = vmax.f32 %v621, 0.0
    %v698 = vmax.f32 %v623, 0.0
    %v699 = vmax.f32 %v626, 0.0
    %v700 = vmax.f32 %v628, 0.0
    %v701 = vmax.f32 %v631, 0.0
    %v702 = vmax.f32 %v633, 0.0
    %v703 = vmax.f32 %v636, 0.0
    %v704 = vmax.f32 %v638, 0.0
    %v705 = vmax.f32 %v641, 0.0
    %v706 = vmax.f32 %v643, 0.0
    %v707 = vmax.f32 %v646, 0.0
    %v708 = vmax.f32 %v648, 0.0
    %v709 = vmax.f32 %v651, 0.0
    %v710 = vmax.f32 %v653, 0.0
    %v711 = vmax.f32 %v656, 0.0
    %v712 = vmax.f32 %v658, 0.0
    %v713 = vmax.f32 %v661, 0.0
    %v714 = vmax.f32 %v663, 0.0
    %v715 = vmax.f32 %v666, 0.0
    %v716 = vmax.f32 %v668, 0.0
    %v717 = vmax.f32 %v671, 0.0
    %v718 = vmax.f32 %v673, 0.0
    %v719 = vmax.f32 %v676, 0.0
    %v720 = vmax.f32 %v678, 0.0
    %v721 = vmax.f32 %v681, 0.0
    %v722 = vmax.f32 %v683, 0.0
    %v723 = vmax.f32 %v686, 0.0
    %v724 = vmax.f32 %v688, 0.0
    %v725 = vmax.f32 %v691, 0.0
    %v726 = vmax.f32 %v693, 0.0
    %v727 = vpack.c.bf16 %v696, %v695
    %v728 = vpack.c.bf16 %v698, %v697
    %v729 = vpack.c.bf16 %v700, %v699
    %v730 = vpack.c.bf16 %v702, %v701
    %v731 = vpack.c.bf16 %v704, %v703
    %v732 = vpack.c.bf16 %v706, %v705
    %v733 = vpack.c.bf16 %v708, %v707
    %v734 = vpack.c.bf16 %v710, %v709
    %v735 = vpack.c.bf16 %v712, %v711
    %v736 = vpack.c.bf16 %v714, %v713
    %v737 = vpack.c.bf16 %v716, %v715
    %v738 = vpack.c.bf16 %v718, %v717
    %v739 = vpack.c.bf16 %v720, %v719
    %v740 = vpack.c.bf16 %v722, %v721
    %v741 = vpack.c.bf16 %v724, %v723
    %v742 = vpack.c.bf16 %v726, %v725
    %v743 = vld [vmem:[%s4] sm:$0xf]
    %v744 = vld [vmem:[%s4 + $0x4] sm:$0xf]
    %v745 = vld [vmem:[%s4 + $0x8] sm:$0xf]
    %v746 = vld [vmem:[%s4 + $0xc] sm:$0xf]
    %v747 = vld [vmem:[%s4 + $0x10] sm:$0xf]
    %v748 = vld [vmem:[%s4 + $0x14] sm:$0xf]
    %v749 = vld [vmem:[%s4 + $0x18] sm:$0xf]
    %v750 = vld [vmem:[%s4 + $0x1c] sm:$0xf]
    %v751 = vld [vmem:[%s4 + $0x20] sm:$0xf]
    %v752 = vld [vmem:[%s4 + $0x24] sm:$0xf]
    %v753 = vld [vmem:[%s4 + $0x28] sm:$0xf]
    %v754 = vld [vmem:[%s4 + $0x2c] sm:$0xf]
    %v755 = vld [vmem:[%s4 + $0x30] sm:$0xf]
    %v756 = vld [vmem:[%s4 + $0x34] sm:$0xf]
    %v757 = vld [vmem:[%s4 + $0x38] sm:$0xf]
    %v758 = vld [vmem:[%s4 + $0x3c] sm:$0xf]
    %v775 = vunpack.c.l.b16 %v743
    %v776 = vunpack.c.l.b16 %v744
    %v777 = vunpack.c.l.b16 %v745
    %v778 = vunpack.c.l.b16 %v746
    %v779 = vunpack.c.l.b16 %v747
    %v780 = vunpack.c.l.b16 %v748
    %v781 = vunpack.c.l.b16 %v749
    %v782 = vunpack.c.l.b16 %v750
    %v783 = vunpack.c.l.b16 %v751
    %v784 = vunpack.c.l.b16 %v752
    %v785 = vunpack.c.l.b16 %v753
    %v786 = vunpack.c.l.b16 %v754
    %v787 = vunpack.c.l.b16 %v755
    %v788 = vunpack.c.l.b16 %v756
    %v789 = vunpack.c.l.b16 %v757
    %v790 = vunpack.c.l.b16 %v758
    %v791 = vpack.c.b16 %v776, %v775
    %v792 = vpack.c.b16 %v778, %v777
    %v793 = vpack.c.b16 %v780, %v779
    %v794 = vpack.c.b16 %v782, %v781
    %v795 = vpack.c.b16 %v784, %v783
    %v796 = vpack.c.b16 %v786, %v785
    %v797 = vpack.c.b16 %v788, %v787
    %v798 = vpack.c.b16 %v790, %v789
    %807 = vmatpush.bf16.msra.mxu0 %v798
    %808 = vmatpush.bf16.msra.mxu0 %v797
    %809 = vmatpush.bf16.msra.mxu0 %v796
    %810 = vmatpush.bf16.msra.mxu0 %v795
    %811 = vmatpush.bf16.msra.mxu0 %v794
    %812 = vmatpush.bf16.msra.mxu0 %v793
    %813 = vmatpush.bf16.msra.mxu0 %v792
    %814 = vmatpush.bf16.msra.mxu0 %v791
    %815 = vmatmul.bf16.gmra.mxu0 %v727
    %v816 = vpop.f32.mrf.mxu0
    %v817 = vadd.f32 0.0, %v816
    %v818 = vpop.f32.mrf.mxu0
    %v819 = vadd.f32 0.0, %v818
    %820 = vmatmul.bf16.gmra.mxu0 %v728
    %v821 = vpop.f32.mrf.mxu0
    %v822 = vadd.f32 0.0, %v821
    %v823 = vpop.f32.mrf.mxu0
    %v824 = vadd.f32 0.0, %v823
    %825 = vmatmul.bf16.gmra.mxu0 %v729
    %v826 = vpop.f32.mrf.mxu0
    %v827 = vadd.f32 0.0, %v826
    %v828 = vpop.f32.mrf.mxu0
    %v829 = vadd.f32 0.0, %v828
    %830 = vmatmul.bf16.gmra.mxu0 %v730
    %v831 = vpop.f32.mrf.mxu0
    %v832 = vadd.f32 0.0, %v831
    %v833 = vpop.f32.mrf.mxu0
    %v834 = vadd.f32 0.0, %v833
    %835 = vmatmul.bf16.gmra.mxu0 %v731
    %v836 = vpop.f32.mrf.mxu0
    %v837 = vadd.f32 0.0, %v836
    %v838 = vpop.f32.mrf.mxu0
    %v839 = vadd.f32 0.0, %v838
    %840 = vmatmul.bf16.gmra.mxu0 %v732
    %v841 = vpop.f32.mrf.mxu0
    %v842 = vadd.f32 0.0, %v841
    %v843 = vpop.f32.mrf.mxu0
    %v844 = vadd.f32 0.0, %v843
    %845 = vmatmul.bf16.gmra.mxu0 %v733
    %v846 = vpop.f32.mrf.mxu0
    %v847 = vadd.f32 0.0, %v846
    %v848 = vpop.f32.mrf.mxu0
    %v849 = vadd.f32 0.0, %v848
    %850 = vmatmul.bf16.gmra.mxu0 %v734
    %v851 = vpop.f32.mrf.mxu0
    %v852 = vadd.f32 0.0, %v851
    %v853 = vpop.f32.mrf.mxu0
    %v854 = vadd.f32 0.0, %v853
    %855 = vmatmul.bf16.gmra.mxu0 %v735
    %v856 = vpop.f32.mrf.mxu0
    %v857 = vadd.f32 0.0, %v856
    %v858 = vpop.f32.mrf.mxu0
    %v859 = vadd.f32 0.0, %v858
    %860 = vmatmul.bf16.gmra.mxu0 %v736
    %v861 = vpop.f32.mrf.mxu0
    %v862 = vadd.f32 0.0, %v861
    %v863 = vpop.f32.mrf.mxu0
    %v864 = vadd.f32 0.0, %v863
    %865 = vmatmul.bf16.gmra.mxu0 %v737
    %v866 = vpop.f32.mrf.mxu0
    %v867 = vadd.f32 0.0, %v866
    %v868 = vpop.f32.mrf.mxu0
    %v869 = vadd.f32 0.0, %v868
    %870 = vmatmul.bf16.gmra.mxu0 %v738
    %v871 = vpop.f32.mrf.mxu0
    %v872 = vadd.f32 0.0, %v871
    %v873 = vpop.f32.mrf.mxu0
    %v874 = vadd.f32 0.0, %v873
    %875 = vmatmul.bf16.gmra.mxu0 %v739
    %v876 = vpop.f32.mrf.mxu0
    %v877 = vadd.f32 0.0, %v876
    %v878 = vpop.f32.mrf.mxu0
    %v879 = vadd.f32 0.0, %v878
    %880 = vmatmul.bf16.gmra.mxu0 %v740
    %v881 = vpop.f32.mrf.mxu0
    %v882 = vadd.f32 0.0, %v881
    %v883 = vpop.f32.mrf.mxu0
    %v884 = vadd.f32 0.0, %v883
    %885 = vmatmul.bf16.gmra.mxu0 %v741
    %v886 = vpop.f32.mrf.mxu0
    %v887 = vadd.f32 0.0, %v886
    %v888 = vpop.f32.mrf.mxu0
    %v889 = vadd.f32 0.0, %v888
    %890 = vmatmul.bf16.gmra.mxu0 %v742
    %v891 = vpop.f32.mrf.mxu0
    %v892 = vadd.f32 0.0, %v891
    %v893 = vpop.f32.mrf.mxu0
    %v894 = vadd.f32 0.0, %v893
    %895 = vdwg.mxu0
    %v896 = vpack.c.bf16 %v819, %v817
    %v897 = vpack.c.bf16 %v824, %v822
    %v898 = vpack.c.bf16 %v829, %v827
    %v899 = vpack.c.bf16 %v834, %v832
    %v900 = vpack.c.bf16 %v839, %v837
    %v901 = vpack.c.bf16 %v844, %v842
    %v902 = vpack.c.bf16 %v849, %v847
    %v903 = vpack.c.bf16 %v854, %v852
    %v904 = vpack.c.bf16 %v859, %v857
    %v905 = vpack.c.bf16 %v864, %v862
    %v906 = vpack.c.bf16 %v869, %v867
    %v907 = vpack.c.bf16 %v874, %v872
    %v908 = vpack.c.bf16 %v879, %v877
    %v909 = vpack.c.bf16 %v884, %v882
    %v910 = vpack.c.bf16 %v889, %v887
    %v911 = vpack.c.bf16 %v894, %v892
    %v912 = vld [vmem:[%s5] sm:$0x1]
    %v914 = vperm.slane %v912, 0
    %916 = vmatpush.bf16.msra.mxu0 %v903
    %917 = vmatpush.bf16.msra.mxu0 %v902
    %918 = vmatpush.bf16.msra.mxu0 %v901
    %919 = vmatpush.bf16.msra.mxu0 %v900
    %920 = vmatpush.bf16.msra.mxu0 %v899
    %921 = vmatpush.bf16.msra.mxu0 %v898
    %922 = vmatpush.bf16.msra.mxu0 %v897
    %923 = vmatpush.bf16.msra.mxu0 %v896
    %924 = vmatmul.bf16.gmra.mxu0 %v453
    %v925 = vpop.f32.mrf.mxu0
    %v926 = vadd.f32 %v914, %v925
    %v927 = vpop.f32.mrf.mxu0
    %v928 = vadd.f32 %v914, %v927
    %929 = vmatmul.bf16.gmra.mxu0 %v455
    %v930 = vpop.f32.mrf.mxu0
    %v931 = vadd.f32 %v914, %v930
    %v932 = vpop.f32.mrf.mxu0
    %v933 = vadd.f32 %v914, %v932
    %934 = vmatmul.bf16.gmra.mxu0 %v457
    %v935 = vpop.f32.mrf.mxu0
    %v936 = vadd.f32 %v914, %v935
    %v937 = vpop.f32.mrf.mxu0
    %v938 = vadd.f32 %v914, %v937
    %939 = vmatmul.bf16.gmra.mxu0 %v459
    %v940 = vpop.f32.mrf.mxu0
    %v941 = vadd.f32 %v914, %v940
    %v942 = vpop.f32.mrf.mxu0
    %v943 = vadd.f32 %v914, %v942
    %944 = vmatmul.bf16.gmra.mxu0 %v461
    %v945 = vpop.f32.mrf.mxu0
    %v946 = vadd.f32 %v914, %v945
    %v947 = vpop.f32.mrf.mxu0
    %v948 = vadd.f32 %v914, %v947
    %949 = vmatmul.bf16.gmra.mxu0 %v463
    %v950 = vpop.f32.mrf.mxu0
    %v951 = vadd.f32 %v914, %v950
    %v952 = vpop.f32.mrf.mxu0
    %v953 = vadd.f32 %v914, %v952
    %954 = vmatmul.bf16.gmra.mxu0 %v465
    %v955 = vpop.f32.mrf.mxu0
    %v956 = vadd.f32 %v914, %v955
    %v957 = vpop.f32.mrf.mxu0
    %v958 = vadd.f32 %v914, %v957
    %959 = vmatmul.bf16.gmra.mxu0 %v467
    %v960 = vpop.f32.mrf.mxu0
    %v961 = vadd.f32 %v914, %v960
    %v962 = vpop.f32.mrf.mxu0
    %v963 = vadd.f32 %v914, %v962
    %964 = vmatmul.bf16.gmra.mxu0 %v469
    %v965 = vpop.f32.mrf.mxu0
    %v966 = vadd.f32 %v914, %v965
    %v967 = vpop.f32.mrf.mxu0
    %v968 = vadd.f32 %v914, %v967
    %969 = vmatmul.bf16.gmra.mxu0 %v471
    %v970 = vpop.f32.mrf.mxu0
    %v971 = vadd.f32 %v914, %v970
    %v972 = vpop.f32.mrf.mxu0
    %v973 = vadd.f32 %v914, %v972
    %974 = vmatmul.bf16.gmra.mxu0 %v473
    %v975 = vpop.f32.mrf.mxu0
    %v976 = vadd.f32 %v914, %v975
    %v977 = vpop.f32.mrf.mxu0
    %v978 = vadd.f32 %v914, %v977
    %979 = vmatmul.bf16.gmra.mxu0 %v475
    %v980 = vpop.f32.mrf.mxu0
    %v981 = vadd.f32 %v914, %v980
    %v982 = vpop.f32.mrf.mxu0
    %v983 = vadd.f32 %v914, %v982
    %984 = vmatmul.bf16.gmra.mxu0 %v477
    %v985 = vpop.f32.mrf.mxu0
    %v986 = vadd.f32 %v914, %v985
    %v987 = vpop.f32.mrf.mxu0
    %v988 = vadd.f32 %v914, %v987
    %989 = vmatmul.bf16.gmra.mxu0 %v479
    %v990 = vpop.f32.mrf.mxu0
    %v991 = vadd.f32 %v914, %v990
    %v992 = vpop.f32.mrf.mxu0
    %v993 = vadd.f32 %v914, %v992
    %994 = vmatmul.bf16.gmra.mxu0 %v481
    %v995 = vpop.f32.mrf.mxu0
    %v996 = vadd.f32 %v914, %v995
    %v997 = vpop.f32.mrf.mxu0
    %v998 = vadd.f32 %v914, %v997
    %999 = vmatmul.bf16.gmra.mxu0 %v483
    %v1000 = vpop.f32.mrf.mxu0
    %v1001 = vadd.f32 %v914, %v1000
    %v1002 = vpop.f32.mrf.mxu0
    %v1003 = vadd.f32 %v914, %v1002
    %1004 = vdwg.mxu0
    %1005 = vmatpush.bf16.msra.mxu0 %v911
    %1006 = vmatpush.bf16.msra.mxu0 %v910
    %1007 = vmatpush.bf16.msra.mxu0 %v909
    %1008 = vmatpush.bf16.msra.mxu0 %v908
    %1009 = vmatpush.bf16.msra.mxu0 %v907
    %1010 = vmatpush.bf16.msra.mxu0 %v906
    %1011 = vmatpush.bf16.msra.mxu0 %v905
    %1012 = vmatpush.bf16.msra.mxu0 %v904
    %1013 = vmatmul.bf16.gmra.mxu0 %v454
    %v1014 = vpop.f32.mrf.mxu0
    %v1015 = vadd.f32 %v926, %v1014
    %v1016 = vpop.f32.mrf.mxu0
    %v1017 = vadd.f32 %v928, %v1016
    %1018 = vmatmul.bf16.gmra.mxu0 %v456
    %v1019 = vpop.f32.mrf.mxu0
    %v1020 = vadd.f32 %v931, %v1019
    %v1021 = vpop.f32.mrf.mxu0
    %v1022 = vadd.f32 %v933, %v1021
    %1023 = vmatmul.bf16.gmra.mxu0 %v458
    %v1024 = vpop.f32.mrf.mxu0
    %v1025 = vadd.f32 %v936, %v1024
    %v1026 = vpop.f32.mrf.mxu0
    %v1027 = vadd.f32 %v938, %v1026
    %1028 = vmatmul.bf16.gmra.mxu0 %v460
    %v1029 = vpop.f32.mrf.mxu0
    %v1030 = vadd.f32 %v941, %v1029
    %v1031 = vpop.f32.mrf.mxu0
    %v1032 = vadd.f32 %v943, %v1031
    %1033 = vmatmul.bf16.gmra.mxu0 %v462
    %v1034 = vpop.f32.mrf.mxu0
    %v1035 = vadd.f32 %v946, %v1034
    %v1036 = vpop.f32.mrf.mxu0
    %v1037 = vadd.f32 %v948, %v1036
    %1038 = vmatmul.bf16.gmra.mxu0 %v464
    %v1039 = vpop.f32.mrf.mxu0
    %v1040 = vadd.f32 %v951, %v1039
    %v1041 = vpop.f32.mrf.mxu0
    %v1042 = vadd.f32 %v953, %v1041
    %1043 = vmatmul.bf16.gmra.mxu0 %v466
    %v1044 = vpop.f32.mrf.mxu0
    %v1045 = vadd.f32 %v956, %v1044
    %v1046 = vpop.f32.mrf.mxu0
    %v1047 = vadd.f32 %v958, %v1046
    %1048 = vmatmul.bf16.gmra.mxu0 %v468
    %v1049 = vpop.f32.mrf.mxu0
    %v1050 = vadd.f32 %v961, %v1049
    %v1051 = vpop.f32.mrf.mxu0
    %v1052 = vadd.f32 %v963, %v1051
    %1053 = vmatmul.bf16.gmra.mxu0 %v470
    %v1054 = vpop.f32.mrf.mxu0
    %v1055 = vadd.f32 %v966, %v1054
    %v1056 = vpop.f32.mrf.mxu0
    %v1057 = vadd.f32 %v968, %v1056
    %1058 = vmatmul.bf16.gmra.mxu0 %v472
    %v1059 = vpop.f32.mrf.mxu0
    %v1060 = vadd.f32 %v971, %v1059
    %v1061 = vpop.f32.mrf.mxu0
    %v1062 = vadd.f32 %v973, %v1061
    %1063 = vmatmul.bf16.gmra.mxu0 %v474
    %v1064 = vpop.f32.mrf.mxu0
    %v1065 = vadd.f32 %v976, %v1064
    %v1066 = vpop.f32.mrf.mxu0
    %v1067 = vadd.f32 %v978, %v1066
    %1068 = vmatmul.bf16.gmra.mxu0 %v476
    %v1069 = vpop.f32.mrf.mxu0
    %v1070 = vadd.f32 %v981, %v1069
    %v1071 = vpop.f32.mrf.mxu0
    %v1072 = vadd.f32 %v983, %v1071
    %1073 = vmatmul.bf16.gmra.mxu0 %v478
    %v1074 = vpop.f32.mrf.mxu0
    %v1075 = vadd.f32 %v986, %v1074
    %v1076 = vpop.f32.mrf.mxu0
    %v1077 = vadd.f32 %v988, %v1076
    %1078 = vmatmul.bf16.gmra.mxu0 %v480
    %v1079 = vpop.f32.mrf.mxu0
    %v1080 = vadd.f32 %v991, %v1079
    %v1081 = vpop.f32.mrf.mxu0
    %v1082 = vadd.f32 %v993, %v1081
    %1083 = vmatmul.bf16.gmra.mxu0 %v482
    %v1084 = vpop.f32.mrf.mxu0
    %v1085 = vadd.f32 %v996, %v1084
    %v1086 = vpop.f32.mrf.mxu0
    %v1087 = vadd.f32 %v998, %v1086
    %1088 = vmatmul.bf16.gmra.mxu0 %v484
    %v1089 = vpop.f32.mrf.mxu0
    %v1090 = vadd.f32 %v1001, %v1089
    %v1091 = vpop.f32.mrf.mxu0
    %v1092 = vadd.f32 %v1003, %v1091
    %1093 = vdwg.mxu0
    %v1094 = vmax.f32 %v1015, 0.0
    %v1095 = vmax.f32 %v1017, 0.0
    %v1096 = vmax.f32 %v1020, 0.0
    %v1097 = vmax.f32 %v1022, 0.0
    %v1098 = vmax.f32 %v1025, 0.0
    %v1099 = vmax.f32 %v1027, 0.0
    %v1100 = vmax.f32 %v1030, 0.0
    %v1101 = vmax.f32 %v1032, 0.0
    %v1102 = vmax.f32 %v1035, 0.0
    %v1103 = vmax.f32 %v1037, 0.0
    %v1104 = vmax.f32 %v1040, 0.0
    %v1105 = vmax.f32 %v1042, 0.0
    %v1106 = vmax.f32 %v1045, 0.0
    %v1107 = vmax.f32 %v1047, 0.0
    %v1108 = vmax.f32 %v1050, 0.0
    %v1109 = vmax.f32 %v1052, 0.0
    %v1110 = vmax.f32 %v1055, 0.0
    %v1111 = vmax.f32 %v1057, 0.0
    %v1112 = vmax.f32 %v1060, 0.0
    %v1113 = vmax.f32 %v1062, 0.0
    %v1114 = vmax.f32 %v1065, 0.0
    %v1115 = vmax.f32 %v1067, 0.0
    %v1116 = vmax.f32 %v1070, 0.0
    %v1117 = vmax.f32 %v1072, 0.0
    %v1118 = vmax.f32 %v1075, 0.0
    %v1119 = vmax.f32 %v1077, 0.0
    %v1120 = vmax.f32 %v1080, 0.0
    %v1121 = vmax.f32 %v1082, 0.0
    %v1122 = vmax.f32 %v1085, 0.0
    %v1123 = vmax.f32 %v1087, 0.0
    %v1124 = vmax.f32 %v1090, 0.0
    %v1125 = vmax.f32 %v1092, 0.0
    %v1126 = vld [vmem:[%s6] sm:$0x1]
    %v1128 = vperm.slane %v1126, 0
    %v1130 = vmul.f32 %v1094, %v1128
    %v1131 = vmul.f32 %v1095, %v1128
    %v1132 = vmul.f32 %v1096, %v1128
    %v1133 = vmul.f32 %v1097, %v1128
    %v1134 = vmul.f32 %v1098, %v1128
    %v1135 = vmul.f32 %v1099, %v1128
    %v1136 = vmul.f32 %v1100, %v1128
    %v1137 = vmul.f32 %v1101, %v1128
    %v1138 = vmul.f32 %v1102, %v1128
    %v1139 = vmul.f32 %v1103, %v1128
    %v1140 = vmul.f32 %v1104, %v1128
    %v1141 = vmul.f32 %v1105, %v1128
    %v1142 = vmul.f32 %v1106, %v1128
    %v1143 = vmul.f32 %v1107, %v1128
    %v1144 = vmul.f32 %v1108, %v1128
    %v1145 = vmul.f32 %v1109, %v1128
    %v1146 = vmul.f32 %v1110, %v1128
    %v1147 = vmul.f32 %v1111, %v1128
    %v1148 = vmul.f32 %v1112, %v1128
    %v1149 = vmul.f32 %v1113, %v1128
    %v1150 = vmul.f32 %v1114, %v1128
    %v1151 = vmul.f32 %v1115, %v1128
    %v1152 = vmul.f32 %v1116, %v1128
    %v1153 = vmul.f32 %v1117, %v1128
    %v1154 = vmul.f32 %v1118, %v1128
    %v1155 = vmul.f32 %v1119, %v1128
    %v1156 = vmul.f32 %v1120, %v1128
    %v1157 = vmul.f32 %v1121, %v1128
    %v1158 = vmul.f32 %v1122, %v1128
    %v1159 = vmul.f32 %v1123, %v1128
    %v1160 = vmul.f32 %v1124, %v1128
    %v1161 = vmul.f32 %v1125, %v1128
    %1162 = vadd.xlane.f32.xlu0 %v1130
    %v1163 = vpop.xlane.xlu0 %1162
    %1164 = vadd.xlane.f32.xlu0 %v1131
    %v1165 = vpop.xlane.xlu0 %1164
    %1166 = vadd.xlane.f32.xlu0 %v1132
    %v1167 = vpop.xlane.xlu0 %1166
    %1168 = vadd.xlane.f32.xlu0 %v1133
    %v1169 = vpop.xlane.xlu0 %1168
    %1170 = vadd.xlane.f32.xlu0 %v1134
    %v1171 = vpop.xlane.xlu0 %1170
    %1172 = vadd.xlane.f32.xlu0 %v1135
    %v1173 = vpop.xlane.xlu0 %1172
    %1174 = vadd.xlane.f32.xlu0 %v1136
    %v1175 = vpop.xlane.xlu0 %1174
    %1176 = vadd.xlane.f32.xlu0 %v1137
    %v1177 = vpop.xlane.xlu0 %1176
    %1178 = vadd.xlane.f32.xlu0 %v1138
    %v1179 = vpop.xlane.xlu0 %1178
    %1180 = vadd.xlane.f32.xlu0 %v1139
    %v1181 = vpop.xlane.xlu0 %1180
    %1182 = vadd.xlane.f32.xlu0 %v1140
    %v1183 = vpop.xlane.xlu0 %1182
    %1184 = vadd.xlane.f32.xlu0 %v1141
    %v1185 = vpop.xlane.xlu0 %1184
    %1186 = vadd.xlane.f32.xlu0 %v1142
    %v1187 = vpop.xlane.xlu0 %1186
    %1188 = vadd.xlane.f32.xlu0 %v1143
    %v1189 = vpop.xlane.xlu0 %1188
    %1190 = vadd.xlane.f32.xlu0 %v1144
    %v1191 = vpop.xlane.xlu0 %1190
    %1192 = vadd.xlane.f32.xlu0 %v1145
    %v1193 = vpop.xlane.xlu0 %1192
    %1194 = vadd.xlane.f32.xlu0 %v1146
    %v1195 = vpop.xlane.xlu0 %1194
    %1196 = vadd.xlane.f32.xlu0 %v1147
    %v1197 = vpop.xlane.xlu0 %1196
    %1198 = vadd.xlane.f32.xlu0 %v1148
    %v1199 = vpop.xlane.xlu0 %1198
    %1200 = vadd.xlane.f32.xlu0 %v1149
    %v1201 = vpop.xlane.xlu0 %1200
    %1202 = vadd.xlane.f32.xlu0 %v1150
    %v1203 = vpop.xlane.xlu0 %1202
    %1204 = vadd.xlane.f32.xlu0 %v1151
    %v1205 = vpop.xlane.xlu0 %1204
    %1206 = vadd.xlane.f32.xlu0 %v1152
    %v1207 = vpop.xlane.xlu0 %1206
    %1208 = vadd.xlane.f32.xlu0 %v1153
    %v1209 = vpop.xlane.xlu0 %1208
    %1210 = vadd.xlane.f32.xlu0 %v1154
    %v1211 = vpop.xlane.xlu0 %1210
    %1212 = vadd.xlane.f32.xlu0 %v1155
    %v1213 = vpop.xlane.xlu0 %1212
    %1214 = vadd.xlane.f32.xlu0 %v1156
    %v1215 = vpop.xlane.xlu0 %1214
    %1216 = vadd.xlane.f32.xlu0 %v1157
    %v1217 = vpop.xlane.xlu0 %1216
    %1218 = vadd.xlane.f32.xlu0 %v1158
    %v1219 = vpop.xlane.xlu0 %1218
    %1220 = vadd.xlane.f32.xlu0 %v1159
    %v1221 = vpop.xlane.xlu0 %1220
    %1222 = vadd.xlane.f32.xlu0 %v1160
    %v1223 = vpop.xlane.xlu0 %1222
    %1224 = vadd.xlane.f32.xlu0 %v1161
    %v1225 = vpop.xlane.xlu0 %1224
    %s1226 = sld [smem:[#allocation2]]
    %v1227 = vstv %s1226
    %v1228 = vadd.f32 %v1163, %v1227
    %v1229 = vadd.f32 %v1165, %v1227
    %v1230 = vadd.f32 %v1167, %v1227
    %v1231 = vadd.f32 %v1169, %v1227
    %v1232 = vadd.f32 %v1171, %v1227
    %v1233 = vadd.f32 %v1173, %v1227
    %v1234 = vadd.f32 %v1175, %v1227
    %v1235 = vadd.f32 %v1177, %v1227
    %v1236 = vadd.f32 %v1179, %v1227
    %v1237 = vadd.f32 %v1181, %v1227
    %v1238 = vadd.f32 %v1183, %v1227
    %v1239 = vadd.f32 %v1185, %v1227
    %v1240 = vadd.f32 %v1187, %v1227
    %v1241 = vadd.f32 %v1189, %v1227
    %v1242 = vadd.f32 %v1191, %v1227
    %v1243 = vadd.f32 %v1193, %v1227
    %v1244 = vadd.f32 %v1195, %v1227
    %v1245 = vadd.f32 %v1197, %v1227
    %v1246 = vadd.f32 %v1199, %v1227
    %v1247 = vadd.f32 %v1201, %v1227
    %v1248 = vadd.f32 %v1203, %v1227
    %v1249 = vadd.f32 %v1205, %v1227
    %v1250 = vadd.f32 %v1207, %v1227
    %v1251 = vadd.f32 %v1209, %v1227
    %v1252 = vadd.f32 %v1211, %v1227
    %v1253 = vadd.f32 %v1213, %v1227
    %v1254 = vadd.f32 %v1215, %v1227
    %v1255 = vadd.f32 %v1217, %v1227
    %v1256 = vadd.f32 %v1219, %v1227
    %v1257 = vadd.f32 %v1221, %v1227
    %v1258 = vadd.f32 %v1223, %v1227
    %v1259 = vadd.f32 %v1225, %v1227
    %vm1260 = vcmask 7168
    %1261 = vst.msk [vmem:[%s8] sm:$0xff] %vm1260, %v1228
    %1262 = vst.msk [vmem:[%s8 + $0x8] sm:$0xff] %vm1260, %v1229
    %1263 = vst.msk [vmem:[%s8 + $0x10] sm:$0xff] %vm1260, %v1230
    %1264 = vst.msk [vmem:[%s8 + $0x18] sm:$0xff] %vm1260, %v1231
    %1265 = vst.msk [vmem:[%s8 + $0x20] sm:$0xff] %vm1260, %v1232
    %1266 = vst.msk [vmem:[%s8 + $0x28] sm:$0xff] %vm1260, %v1233
    %1267 = vst.msk [vmem:[%s8 + $0x30] sm:$0xff] %vm1260, %v1234
    %1268 = vst.msk [vmem:[%s8 + $0x38] sm:$0xff] %vm1260, %v1235
    %1269 = vst.msk [vmem:[%s8 + $0x40] sm:$0xff] %vm1260, %v1236
    %1270 = vst.msk [vmem:[%s8 + $0x48] sm:$0xff] %vm1260, %v1237
    %1271 = vst.msk [vmem:[%s8 + $0x50] sm:$0xff] %vm1260, %v1238
    %1272 = vst.msk [vmem:[%s8 + $0x58] sm:$0xff] %vm1260, %v1239
    %1273 = vst.msk [vmem:[%s8 + $0x60] sm:$0xff] %vm1260, %v1240
    %1274 = vst.msk [vmem:[%s8 + $0x68] sm:$0xff] %vm1260, %v1241
    %1275 = vst.msk [vmem:[%s8 + $0x70] sm:$0xff] %vm1260, %v1242
    %1276 = vst.msk [vmem:[%s8 + $0x78] sm:$0xff] %vm1260, %v1243
    %1277 = vst.msk [vmem:[%s8 + $0x80] sm:$0xff] %vm1260, %v1244
    %1278 = vst.msk [vmem:[%s8 + $0x88] sm:$0xff] %vm1260, %v1245
    %1279 = vst.msk [vmem:[%s8 + $0x90] sm:$0xff] %vm1260, %v1246
    %1280 = vst.msk [vmem:[%s8 + $0x98] sm:$0xff] %vm1260, %v1247
    %1281 = vst.msk [vmem:[%s8 + $0xa0] sm:$0xff] %vm1260, %v1248
    %1282 = vst.msk [vmem:[%s8 + $0xa8] sm:$0xff] %vm1260, %v1249
    %1283 = vst.msk [vmem:[%s8 + $0xb0] sm:$0xff] %vm1260, %v1250
    %1284 = vst.msk [vmem:[%s8 + $0xb8] sm:$0xff] %vm1260, %v1251
    %1285 = vst.msk [vmem:[%s8 + $0xc0] sm:$0xff] %vm1260, %v1252
    %1286 = vst.msk [vmem:[%s8 + $0xc8] sm:$0xff] %vm1260, %v1253
    %1287 = vst.msk [vmem:[%s8 + $0xd0] sm:$0xff] %vm1260, %v1254
    %1288 = vst.msk [vmem:[%s8 + $0xd8] sm:$0xff] %vm1260, %v1255
    %1289 = vst.msk [vmem:[%s8 + $0xe0] sm:$0xff] %vm1260, %v1256
    %1290 = vst.msk [vmem:[%s8 + $0xe8] sm:$0xff] %vm1260, %v1257
    %1291 = vst.msk [vmem:[%s8 + $0xf0] sm:$0xff] %vm1260, %v1258
    %1292 = vst.msk [vmem:[%s8 + $0xf8] sm:$0xff] %vm1260, %v1259
    // Predicated region
    $region38: #{tpu_custom_call.1} parent=1 // pred_check
      _
    $region39: #{tpu_custom_call.1} parent=1 // pred_check_branch
      %1294 = sbr.rel (0) target = $region41
    $region40: #{tpu_custom_call.1} parent=1 // pred_region
      _
    $region41: #{tpu_custom_call.1} parent=1 // pred_fallthru
      _
    // Predicated region
    $region42: #{tpu_custom_call.1} parent=1 // pred_check
      _
    $region43: #{tpu_custom_call.1} parent=1 // pred_check_branch
      %1296 = sbr.rel (0) target = $region45
    $region44: #{tpu_custom_call.1} parent=1 // pred_region
      _
    $region45: #{tpu_custom_call.1} parent=1 // pred_fallthru
      _
    %1297 = vsyncpa [#allocation4], 1

</llo_original>
